<compile_context>
chip_gen: v7x
topology: tpu7x:2x2x1
jax: 0.10.0
libtpu: 0.0.40
codegen_flags: <defaults>
</compile_context>

<pallas_src>
import jax
import jax.numpy as jnp
from jax import lax
from jax.experimental import pallas as pl
from jax.experimental.pallas import tpu as pltpu


def _round_up(x, m):
    return ((x + m - 1) // m) * m


def _vmem_budget_bytes():
    """Generation-aware VMEM budget (v5e/v6e: 128 MiB, v7x: 64 MiB per TC)."""
    cap = 64 * 1024 * 1024
    try:
        cap = int(getattr(pltpu.get_tpu_info(), "vmem_capacity_bytes", cap))
    except Exception:
        pass
    return max(16 * 1024 * 1024, min(int(cap * 0.6), 96 * 1024 * 1024))


def encoder_gather_kernel(idx_ref, fea_ref, emb_ref, w1_ref, w2_ref, b_ref, o_ref):
    """Fused `embed_matrix[nodes]` gather + concat + nn.Linear.

    torch:  out = cat([fea, embed[nodes]], dim=1) @ W.T + b   with W: (D, 2D)
    here :  gathered = onehot(nodes) @ embed   (exact row select on the MXU)
            out      = fea @ W1 + gathered @ W2 + b
    bf16 operands on the MXU, f32 accumulation and f32 bias add.
    Note: an out-of-range node id selects no row (zero) instead of raising
    like torch indexing would.
    """
    T = idx_ref.shape[0]
    E = emb_ref.shape[0]
    ids = lax.broadcasted_iota(jnp.int32, (T, E), 1)
    onehot = (ids == idx_ref[...]).astype(emb_ref.dtype)               # (T, E)
    gathered = jnp.dot(onehot, emb_ref[...],
                       preferred_element_type=jnp.float32).astype(fea_ref.dtype)
    acc = jnp.dot(fea_ref[...], w1_ref[...], preferred_element_type=jnp.float32)
    acc = acc + jnp.dot(gathered, w2_ref[...], preferred_element_type=jnp.float32)
    o_ref[...] = (acc + b_ref[...]).astype(o_ref.dtype)


def encoder_pregathered_kernel(fea_ref, gath_ref, w1_ref, w2_ref, b_ref, o_ref):
    """Fallback hot path when the gathered rows are materialized outside."""
    acc = jnp.dot(fea_ref[...], w1_ref[...], preferred_element_type=jnp.float32)
    acc = acc + jnp.dot(gath_ref[...], w2_ref[...], preferred_element_type=jnp.float32)
    o_ref[...] = (acc + b_ref[...]).astype(o_ref.dtype)


def prepare_linear_params(weight, bias, compute_dtype=jnp.bfloat16):
    """Transpose/split/cast the nn.Linear(2D, D) parameters.

    Call this ONCE outside a training/inference step so the transpose/cast is
    not re-materialized in HBM every step. No lane padding is needed: output
    blocks use the full feature width D.
    """
    D = weight.shape[0]
    assert weight.shape == (D, 2 * D), "expected torch nn.Linear(2D, D).weight of shape (D, 2D)"
    w_t = weight.T.astype(compute_dtype)         # (2D, D)
    w1, w2 = w_t[:D, :], w_t[D:, :]              # each (D, D)
    b = bias.astype(jnp.float32).reshape(1, D)
    return w1, w2, b


def encoder_forward(nodes, nodes_fea, embed_matrix, weight, bias, *,
                    row_tile=None, compute_dtype=jnp.bfloat16, fuse_gather=None):
    """JAX/Pallas equivalent of encoder.forward.

    nodes        : (N,)    int   — node indices (nodes_u or nodes_i)
    nodes_fea    : (N, D)  float — first output of the aggregator
    embed_matrix : (E, D)  float — second output of the aggregator
    weight       : (D, 2D) float — nn.Linear(2D, D).weight (torch layout)
    bias         : (D,)    float — nn.Linear(2D, D).bias
    returns      : (N, D)
    """
    N, D = nodes_fea.shape
    E = embed_matrix.shape[0]
    out_dtype = nodes_fea.dtype

    w1, w2, b = prepare_linear_params(weight, bias, compute_dtype)

    csz = jnp.dtype(compute_dtype).itemsize
    osz = jnp.dtype(out_dtype).itemsize
    budget = _vmem_budget_bytes()

    # Keep the embedding table resident in VMEM (in-kernel gather) only if it
    # leaves most of the VMEM budget free for the row tiles.
    emb_bytes = E * D * csz
    if fuse_gather is None:
        fuse_gather = emb_bytes <= budget // 4

    weight_bytes = 2 * D * D * csz + D * 4
    resident = weight_bytes + (emb_bytes if fuse_gather else 0)
    # Double-buffered per-row traffic: activation tile + output tile
    # (+ node-id tile if fused, + gathered tile if not).
    per_row = 2 * D * csz + 2 * D * osz + (2 * 4 if fuse_gather else 2 * D * csz)

    sub = 16 if csz == 2 else 8                  # sublane packing multiple
    if row_tile is None:
        row_tile = 1024                          # big tiles amortize ~0.35us/step overhead
    max_rows = max(sub, int((budget - resident) // max(per_row, 1)))
    row_tile = max(sub, min(int(row_tile), (max_rows // sub) * sub, _round_up(N, sub)))
    if N >= 2 * sub:
        # Keep >=2 grid steps so the 'parallel' row axis can shard across the
        # two TensorCores on v7x (negligible overhead on single-core chips).
        row_tile = max(sub, min(row_tile, _round_up(pl.cdiv(N, 2), sub)))

    grid = (pl.cdiv(N, row_tile),)               # ragged last block is masked by Pallas

    est_vmem = resident + row_tile * per_row + 2 * 1024 * 1024
    vmem_limit = int(min(max(est_vmem, 16 * 1024 * 1024), budget))

    fea = nodes_fea.astype(compute_dtype)

    compiler_params = pltpu.CompilerParams(
        dimension_semantics=("parallel",),
        vmem_limit_bytes=vmem_limit,
    )
    row_spec = pl.BlockSpec((row_tile, D), lambda i: (i, 0))
    out_spec = pl.BlockSpec((row_tile, D), lambda i: (i, 0))
    w_spec = pl.BlockSpec((D, D), lambda i: (0, 0))      # resident
    b_spec = pl.BlockSpec((1, D), lambda i: (0, 0))      # resident, f32

    if fuse_gather:
        idx = jnp.asarray(nodes, jnp.int32).reshape(N, 1)
        emb = embed_matrix.astype(compute_dtype)
        return pl.pallas_call(
            encoder_gather_kernel,
            out_shape=jax.ShapeDtypeStruct((N, D), out_dtype),
            grid_spec=pltpu.PrefetchScalarGridSpec(
                num_scalar_prefetch=0,
                grid=grid,
                in_specs=[
                    pl.BlockSpec((row_tile, 1), lambda i: (i, 0)),   # node ids tile
                    row_spec,                                        # nodes_fea tile
                    pl.BlockSpec((E, D), lambda i: (0, 0)),          # embed table (resident)
                    w_spec, w_spec, b_spec,
                ],
                out_specs=out_spec,
            ),
            compiler_params=compiler_params,
        )(idx, fea, emb, w1, w2, b)

    # Fallback for embedding tables too large to keep resident in VMEM: gather
    # outside (jnp.take clamps OOB indices; torch indexing would raise).
    # TODO(synk): replace with scalar-prefetch `nodes` + per-row manual DMA gather
    # from an ANY-space embed_matrix (P2/P4) to remove this extra N*D HBM round trip.
    gathered = jnp.take(embed_matrix.astype(compute_dtype), nodes, axis=0)
    return pl.pallas_call(
        encoder_pregathered_kernel,
        out_shape=jax.ShapeDtypeStruct((N, D), out_dtype),
        grid_spec=pltpu.PrefetchScalarGridSpec(
            num_scalar_prefetch=0,
            grid=grid,
            in_specs=[row_spec, row_spec, w_spec, w_spec, b_spec],
            out_specs=out_spec,
        ),
        compiler_params=compiler_params,
    )(fea, gathered, w1, w2, b)


def reference_forward(nodes, nodes_fea, embed_matrix, weight, bias):
    combined = jnp.concatenate([nodes_fea, embed_matrix[nodes]], axis=1)
    return combined @ weight.T + bias


if __name__ == "__main__":
    # Small, deterministic synthetic setup (the "aggregator" outputs are
    # stand-in random tensors). N is deliberately NOT tile-aligned so the
    # ragged last block, the 2-step grid and the in-kernel gather are exercised.
    embed_dim = 32        # D
    num_entities = 64     # rows of embed_matrix (E)
    num_nodes = 200       # N (batch of node ids)

    key = jax.random.PRNGKey(0)
    k_fea, k_emb, k_w, k_b, k_idx = jax.random.split(key, 5)

    nodes = jax.random.randint(k_idx, (num_nodes,), 0, num_entities, dtype=jnp.int32)
    nodes_fea = jax.random.normal(k_fea, (num_nodes, embed_dim), dtype=jnp.float32)
    embed_matrix = jax.random.normal(k_emb, (num_entities, embed_dim), dtype=jnp.float32)

    # nn.Linear(2D, D) parameters, deterministically initialized (uniform like torch).
    fan_in = 2 * embed_dim
    bound = float(fan_in) ** -0.5
    weight = jax.random.uniform(k_w, (embed_dim, 2 * embed_dim),
                                minval=-bound, maxval=bound, dtype=jnp.float32)
    bias = jax.random.uniform(k_b, (embed_dim,),
                              minval=-bound, maxval=bound, dtype=jnp.float32)

    ref = reference_forward(nodes, nodes_fea, embed_matrix, weight, bias)

    # Primary path: fused in-kernel gather (embedding table resident in VMEM).
    out = jax.block_until_ready(
        encoder_forward(nodes, nodes_fea, embed_matrix, weight, bias))
    assert out.shape == (num_nodes, embed_dim)
    # bf16 MXU inputs with f32 accumulation vs an all-f32 reference.
    assert jnp.allclose(out, ref, atol=5e-2, rtol=5e-2), "mismatch vs reference (fused gather)"

    # Fallback path (pre-gathered rows), exercised explicitly for coverage.
    out_fb = jax.block_until_ready(
        encoder_forward(nodes, nodes_fea, embed_matrix, weight, bias,
                        row_tile=64, fuse_gather=False))
    assert jnp.allclose(out_fb, ref, atol=5e-2, rtol=5e-2), "mismatch vs reference (fallback)"

    print("KERNEL_OK")
</pallas_src>

<mosaic_0001>
module attributes {stable_mosaic.version = 11 : i64} {
  func.func @encoder_gather_kernel(%arg0: i32, %arg1: memref<112x1xi32, #tpu.memory_space<vmem>>, %arg2: memref<112x32xbf16, #tpu.memory_space<vmem>>, %arg3: memref<64x32xbf16, #tpu.memory_space<vmem>>, %arg4: memref<32x32xbf16, #tpu.memory_space<vmem>>, %arg5: memref<32x32xbf16, #tpu.memory_space<vmem>>, %arg6: memref<1x32xf32, #tpu.memory_space<vmem>>, %arg7: memref<112x32xf32, #tpu.memory_space<vmem>>) attributes {dimension_semantics = [#tpu.dimension_semantics<parallel>], iteration_bounds = array<i64: 2>, scalar_prefetch = 0 : i64, scratch_operands = 0 : i64, tpu.core_type = #tpu.core_type<tc>, window_params = [{transform_indices = @transform_0, window_bounds = array<i64: 112, 1>}, {transform_indices = @transform_1, window_bounds = array<i64: 112, 32>}, {pipeline_mode = #tpu.pipeline_mode<synchronous>, transform_indices = @transform_2, window_bounds = array<i64: 64, 32>}, {pipeline_mode = #tpu.pipeline_mode<synchronous>, transform_indices = @transform_3, window_bounds = array<i64: 32, 32>}, {pipeline_mode = #tpu.pipeline_mode<synchronous>, transform_indices = @transform_4, window_bounds = array<i64: 32, 32>}, {pipeline_mode = #tpu.pipeline_mode<synchronous>, transform_indices = @transform_5, window_bounds = array<i64: 1, 32>}, {transform_indices = @transform_6, window_bounds = array<i64: 112, 32>}]} {
    %0 = tpu.iota {dimensions = array<i32: 1>} : vector<112x64xi32>
    %c0 = arith.constant 0 : index
    %c0_0 = arith.constant 0 : index
    %1 = vector.load %arg1[%c0, %c0_0] : memref<112x1xi32, #tpu.memory_space<vmem>>, vector<112x1xi32>
    %2 = vector.broadcast %1 : vector<112x1xi32> to vector<112x64xi32>
    %3 = arith.cmpi eq, %0, %2 : vector<112x64xi32>
    %4 = arith.extui %3 : vector<112x64xi1> to vector<112x64xi32>
    %5 = arith.sitofp %4 : vector<112x64xi32> to vector<112x64xf32>
    %6 = arith.truncf %5 : vector<112x64xf32> to vector<112x64xbf16>
    %c0_1 = arith.constant 0 : index
    %c0_2 = arith.constant 0 : index
    %7 = vector.load %arg3[%c0_1, %c0_2] : memref<64x32xbf16, #tpu.memory_space<vmem>>, vector<64x32xbf16>
    %cst = arith.constant dense<0.000000e+00> : vector<112x32xf32>
    %8 = tpu.matmul %6, %7, %cst {dimension_numbers = #tpu.dot_dimension_numbers<[1], [0], [0], [1], [0, 0, 1, 1], [], []>} : vector<112x64xbf16>, vector<64x32xbf16>, vector<112x32xf32> -> vector<112x32xf32>
    %9 = arith.truncf %8 : vector<112x32xf32> to vector<112x32xbf16>
    %c0_3 = arith.constant 0 : index
    %c0_4 = arith.constant 0 : index
    %10 = vector.load %arg2[%c0_3, %c0_4] : memref<112x32xbf16, #tpu.memory_space<vmem>>, vector<112x32xbf16>
    %c0_5 = arith.constant 0 : index
    %c0_6 = arith.constant 0 : index
    %11 = vector.load %arg4[%c0_5, %c0_6] : memref<32x32xbf16, #tpu.memory_space<vmem>>, vector<32x32xbf16>
    %cst_7 = arith.constant dense<0.000000e+00> : vector<112x32xf32>
    %12 = tpu.matmul %10, %11, %cst_7 {dimension_numbers = #tpu.dot_dimension_numbers<[1], [0], [0], [1], [0, 0, 1, 1], [], []>} : vector<112x32xbf16>, vector<32x32xbf16>, vector<112x32xf32> -> vector<112x32xf32>
    %c0_8 = arith.constant 0 : index
    %c0_9 = arith.constant 0 : index
    %13 = vector.load %arg5[%c0_8, %c0_9] : memref<32x32xbf16, #tpu.memory_space<vmem>>, vector<32x32xbf16>
    %cst_10 = arith.constant dense<0.000000e+00> : vector<112x32xf32>
    %14 = tpu.matmul %9, %13, %cst_10 {dimension_numbers = #tpu.dot_dimension_numbers<[1], [0], [0], [1], [0, 0, 1, 1], [], []>} : vector<112x32xbf16>, vector<32x32xbf16>, vector<112x32xf32> -> vector<112x32xf32>
    %15 = arith.addf %12, %14 : vector<112x32xf32>
    %c0_11 = arith.constant 0 : index
    %c0_12 = arith.constant 0 : index
    %16 = vector.load %arg6[%c0_11, %c0_12] : memref<1x32xf32, #tpu.memory_space<vmem>>, vector<1x32xf32>
    %17 = vector.broadcast %16 : vector<1x32xf32> to vector<112x32xf32>
    %18 = arith.addf %15, %17 : vector<112x32xf32>
    %c0_13 = arith.constant 0 : index
    %c0_14 = arith.constant 0 : index
    %19 = vector.load %arg7[%c0_13, %c0_14] : memref<112x32xf32, #tpu.memory_space<vmem>>, vector<112x32xf32>
    tpu.vector_store %arg7[%c0_13, %c0_14], %18 {strides = array<i32>} : memref<112x32xf32, #tpu.memory_space<vmem>>, vector<112x32xf32>,
    return
  }
  func.func @transform_0(%arg0: i32) -> (i32, i32) {
    %c0_i32 = arith.constant 0 : i32
    %c0_i32_0 = arith.constant 0 : i32
    return %arg0, %c0_i32 : i32, i32
  }
  func.func @transform_1(%arg0: i32) -> (i32, i32) {
    %c0_i32 = arith.constant 0 : i32
    %c0_i32_0 = arith.constant 0 : i32
    return %arg0, %c0_i32 : i32, i32
  }
  func.func @transform_2(%arg0: i32) -> (i32, i32) {
    %c0_i32 = arith.constant 0 : i32
    %c0_i32_0 = arith.constant 0 : i32
    %c0_i32_1 = arith.constant 0 : i32
    return %c0_i32, %c0_i32_0 : i32, i32
  }
  func.func @transform_3(%arg0: i32) -> (i32, i32) {
    %c0_i32 = arith.constant 0 : i32
    %c0_i32_0 = arith.constant 0 : i32
    %c0_i32_1 = arith.constant 0 : i32
    return %c0_i32, %c0_i32_0 : i32, i32
  }
  func.func @transform_4(%arg0: i32) -> (i32, i32) {
    %c0_i32 = arith.constant 0 : i32
    %c0_i32_0 = arith.constant 0 : i32
    %c0_i32_1 = arith.constant 0 : i32
    return %c0_i32, %c0_i32_0 : i32, i32
  }
  func.func @transform_5(%arg0: i32) -> (i32, i32) {
    %c0_i32 = arith.constant 0 : i32
    %c0_i32_0 = arith.constant 0 : i32
    %c0_i32_1 = arith.constant 0 : i32
    return %c0_i32, %c0_i32_0 : i32, i32
  }
  func.func @transform_6(%arg0: i32) -> (i32, i32) {
    %c0_i32 = arith.constant 0 : i32
    %c0_i32_0 = arith.constant 0 : i32
    return %arg0, %c0_i32 : i32, i32
  }
}

</mosaic_0001>

<llo_original>
// kernel: tpu_custom_call.1
$region0: #{tpu_custom_call.1}
  #allocation0 [shape = 'u32[]', space=smem, size = 0x4, offset = 0x4, fixed_abs, tag = 'smem constant byte address 0x4 - core index']
  #allocation1 [shape = 'u32[144,128]{1,0:T(1,128)}', space=vmem, size = 0x12000, scoped, tag = 'internal scratch']
  %s0 = inlined_call_operand.vmem [shape: s32[200,1], index: 0, kind: input, shape index: {}]
  %s1 = inlined_call_operand.vmem [shape: bf16[200,32], index: 1, kind: input, shape index: {}]
  %s2 = inlined_call_operand.vmem [shape: bf16[64,32], index: 2, kind: input, shape index: {}]
  %s3 = inlined_call_operand.vmem [shape: bf16[32,32], index: 3, kind: input, shape index: {}]
  %s4 = inlined_call_operand.vmem [shape: bf16[32,32], index: 4, kind: input, shape index: {}]
  %s5 = inlined_call_operand.vmem [shape: f32[1,32], index: 5, kind: input, shape index: {}]
  %s6 = inlined_call_operand.vmem [shape: f32[200,32], index: 6, kind: output, shape index: {}]
  %s7 = sld [smem:[#allocation0]]
  $region105: #{tpu_custom_call.1} parent=0
    _
  %s9 = ssub.s32 1, %s7
  %s10 = scalar_select 0, %s9, %s7
  $region1: #{tpu_custom_call.1} parent=0
    #allocation2 [shape = 'u8[114688]{0}', space=vmem, size = 0x1c000, scoped, tag = 'output window, operand 0']
    loop: start=0, step=1, limit=4
    $region2: #{tpu_custom_call.1} parent=1 // loop_pre_header
      _
    $region3: #{tpu_custom_call.1} parent=1 // loop_header
      %s12 = sphi 0, %s16
      %p13 = scmp.ge.s32.totalorder %s12, 4
      %s22 = sphi 0, %s24
      %s25 = sphi 0, %s22
      %s26 = sphi 0, %s25
      %s42 = sphi 0, %s26
      %s48 = sphi 0, %s50
      %s51 = sphi 0, %s48
      %s52 = sphi 0, %s51
      %s68 = sphi 0, %s52
      %s72 = sphi 0, %s72
      %s74 = sphi 0, %s72
      %s75 = sphi 0, %s74
      %s89 = sphi 0, %s75
      %s93 = sphi 0, %s93
      %s95 = sphi 0, %s93
      %s96 = sphi 0, %s95
      %s110 = sphi 0, %s96
      %s114 = sphi 0, %s114
      %s116 = sphi 0, %s114
      %s117 = sphi 0, %s116
      %s131 = sphi 0, %s117
      %s135 = sphi 0, %s135
      %s137 = sphi 0, %s135
      %s138 = sphi 0, %s137
      %s152 = sphi 0, %s138
      %s158 = sphi 0, %s160
      %s161 = sphi 0, %s158
      %s162 = sphi 0, %s161
      %s178 = sphi 0, %s162
    $region4: #{tpu_custom_call.1} parent=1 // loop_header_branch
      %15 = sbr.rel (%p13) target = $region8
    $region5: #{tpu_custom_call.1} parent=1 // loop_body
      %s17 = ssub.s32 %s12, 1
      %s18 = ssub.s32 %s12, 2
      %s19 = sadd.s32 %s12, 1
      %s20 = ssub.s32 %s12, %s19
      %p21 = scmp.eq.s32.totalorder %s20, 0
      %s23 = sadd.s32 %s22, 1
      %s24 = scalar_select %p21, %s22, %s23
      %p27 = pneg %p21
      %p28 = scmp.eq.s32.totalorder %s12, 1
      %p29 = por %p27, %p28
      %p30 = scmp.ne.s32.totalorder %s22, %s25
      %p31 = scmp.eq.s32.totalorder %s12, 0
      %p32 = por %p30, %p31
      %p33 = scmp.ne.s32.totalorder %s22, %s25
      %p34 = scmp.eq.s32.totalorder %s17, 1
      %p35 = por %p33, %p34
      %p36 = scmp.ne.s32.totalorder %s25, %s26
      %p37 = scmp.eq.s32.totalorder %s17, 0
      %p38 = por %p36, %p37
      %p39 = scmp.ne.s32.totalorder %s25, %s26
      %p40 = scmp.eq.s32.totalorder %s18, 1
      %p41 = por %p39, %p40
      %p43 = scmp.ne.s32.totalorder %s26, %s42
      %p44 = scmp.eq.s32.totalorder %s18, 0
      %p45 = por %p43, %p44
      %s46 = ssub.s32 %s12, %s19
      %p47 = scmp.eq.s32.totalorder %s46, 0
      %s49 = sadd.s32 %s48, 1
      %s50 = scalar_select %p47, %s48, %s49
      %p53 = pneg %p47
      %p54 = scmp.eq.s32.totalorder %s12, 1
      %p55 = por %p53, %p54
      %p56 = scmp.ne.s32.totalorder %s48, %s51
      %p57 = scmp.eq.s32.totalorder %s12, 0
      %p58 = por %p56, %p57
      %p59 = scmp.ne.s32.totalorder %s48, %s51
      %p60 = scmp.eq.s32.totalorder %s17, 1
      %p61 = por %p59, %p60
      %p62 = scmp.ne.s32.totalorder %s51, %s52
      %p63 = scmp.eq.s32.totalorder %s17, 0
      %p64 = por %p62, %p63
      %p65 = scmp.ne.s32.totalorder %s51, %s52
      %p66 = scmp.eq.s32.totalorder %s18, 1
      %p67 = por %p65, %p66
      %p69 = scmp.ne.s32.totalorder %s52, %s68
      %p70 = scmp.eq.s32.totalorder %s18, 0
      %p71 = por %p69, %p70
      %s73 = sadd.s32 %s72, 1
      %p76 = scmp.eq.s32.totalorder %s12, 1
      %p77 = scmp.ne.s32.totalorder %s72, %s74
      %p78 = scmp.eq.s32.totalorder %s12, 0
      %p79 = por %p77, %p78
      %p80 = scmp.ne.s32.totalorder %s72, %s74
      %p81 = scmp.eq.s32.totalorder %s17, 1
      %p82 = por %p80, %p81
      %p83 = scmp.ne.s32.totalorder %s74, %s75
      %p84 = scmp.eq.s32.totalorder %s17, 0
      %p85 = por %p83, %p84
      %p86 = scmp.ne.s32.totalorder %s74, %s75
      %p87 = scmp.eq.s32.totalorder %s18, 1
      %p88 = por %p86, %p87
      %p90 = scmp.ne.s32.totalorder %s75, %s89
      %p91 = scmp.eq.s32.totalorder %s18, 0
      %p92 = por %p90, %p91
      %s94 = sadd.s32 %s93, 1
      %p97 = scmp.eq.s32.totalorder %s12, 1
      %p98 = scmp.ne.s32.totalorder %s93, %s95
      %p99 = scmp.eq.s32.totalorder %s12, 0
      %p100 = por %p98, %p99
      %p101 = scmp.ne.s32.totalorder %s93, %s95
      %p102 = scmp.eq.s32.totalorder %s17, 1
      %p103 = por %p101, %p102
      %p104 = scmp.ne.s32.totalorder %s95, %s96
      %p105 = scmp.eq.s32.totalorder %s17, 0
      %p106 = por %p104, %p105
      %p107 = scmp.ne.s32.totalorder %s95, %s96
      %p108 = scmp.eq.s32.totalorder %s18, 1
      %p109 = por %p107, %p108
      %p111 = scmp.ne.s32.totalorder %s96, %s110
      %p112 = scmp.eq.s32.totalorder %s18, 0
      %p113 = por %p111, %p112
      %s115 = sadd.s32 %s114, 1
      %p118 = scmp.eq.s32.totalorder %s12, 1
      %p119 = scmp.ne.s32.totalorder %s114, %s116
      %p120 = scmp.eq.s32.totalorder %s12, 0
      %p121 = por %p119, %p120
      %p122 = scmp.ne.s32.totalorder %s114, %s116
      %p123 = scmp.eq.s32.totalorder %s17, 1
      %p124 = por %p122, %p123
      %p125 = scmp.ne.s32.totalorder %s116, %s117
      %p126 = scmp.eq.s32.totalorder %s17, 0
      %p127 = por %p125, %p126
      %p128 = scmp.ne.s32.totalorder %s116, %s117
      %p129 = scmp.eq.s32.totalorder %s18, 1
      %p130 = por %p128, %p129
      %p132 = scmp.ne.s32.totalorder %s117, %s131
      %p133 = scmp.eq.s32.totalorder %s18, 0
      %p134 = por %p132, %p133
      %s136 = sadd.s32 %s135, 1
      %p139 = scmp.eq.s32.totalorder %s12, 1
      %p140 = scmp.ne.s32.totalorder %s135, %s137
      %p141 = scmp.eq.s32.totalorder %s12, 0
      %p142 = por %p140, %p141
      %p143 = scmp.ne.s32.totalorder %s135, %s137
      %p144 = scmp.eq.s32.totalorder %s17, 1
      %p145 = por %p143, %p144
      %p146 = scmp.ne.s32.totalorder %s137, %s138
      %p147 = scmp.eq.s32.totalorder %s17, 0
      %p148 = por %p146, %p147
      %p149 = scmp.ne.s32.totalorder %s137, %s138
      %p150 = scmp.eq.s32.totalorder %s18, 1
      %p151 = por %p149, %p150
      %p153 = scmp.ne.s32.totalorder %s138, %s152
      %p154 = scmp.eq.s32.totalorder %s18, 0
      %p155 = por %p153, %p154
      %s156 = ssub.s32 %s12, %s19
      %p157 = scmp.eq.s32.totalorder %s156, 0
      %s159 = sadd.s32 %s158, 1
      %s160 = scalar_select %p157, %s158, %s159
      %p163 = pneg %p157
      %p164 = scmp.eq.s32.totalorder %s12, 1
      %p165 = por %p163, %p164
      %p166 = scmp.ne.s32.totalorder %s158, %s161
      %p167 = scmp.eq.s32.totalorder %s12, 0
      %p168 = por %p166, %p167
      %p169 = scmp.ne.s32.totalorder %s158, %s161
      %p170 = scmp.eq.s32.totalorder %s17, 1
      %p171 = por %p169, %p170
      %p172 = scmp.ne.s32.totalorder %s161, %s162
      %p173 = scmp.eq.s32.totalorder %s17, 0
      %p174 = por %p172, %p173
      %p175 = scmp.ne.s32.totalorder %s161, %s162
      %p176 = scmp.eq.s32.totalorder %s18, 1
      %p177 = por %p175, %p176
      %p179 = scmp.ne.s32.totalorder %s162, %s178
      %p180 = scmp.eq.s32.totalorder %s18, 0
      %p181 = por %p179, %p180
      %p182 = scmp.le.s32.totalorder 1, %s12
      %p183 = scmp.lt.s32.totalorder %s12, 3
      %p184 = pnand %p182, %p183
      %p185 = pneg %p184
      // Predicated region
      $region9: #{tpu_custom_call.1} parent=5 // pred_check
        _
      $region10: #{tpu_custom_call.1} parent=5 // pred_check_branch
        %187 = sbr.rel (%p184) target = $region12
      $region11: #{tpu_custom_call.1} parent=5 // pred_region
        %s188 = ssub.s32 %s12, 1
        // Predicated region
        $region13: #{tpu_custom_call.1} parent=11 // pred_check
          %p189 = pneg %p85
        $region14: #{tpu_custom_call.1} parent=11 // pred_check_branch
          %191 = sbr.rel (%p189) target = $region16
        $region15: #{tpu_custom_call.1} parent=11 // pred_region
          _
        $region16: #{tpu_custom_call.1} parent=11 // pred_fallthru
          _
        // Predicated region
        $region17: #{tpu_custom_call.1} parent=11 // pred_check
          %p192 = pneg %p106
        $region18: #{tpu_custom_call.1} parent=11 // pred_check_branch
          %194 = sbr.rel (%p192) target = $region20
        $region19: #{tpu_custom_call.1} parent=11 // pred_region
          _
        $region20: #{tpu_custom_call.1} parent=11 // pred_fallthru
          _
        // Predicated region
        $region21: #{tpu_custom_call.1} parent=11 // pred_check
          %p195 = pneg %p127
        $region22: #{tpu_custom_call.1} parent=11 // pred_check_branch
          %197 = sbr.rel (%p195) target = $region24
        $region23: #{tpu_custom_call.1} parent=11 // pred_region
          _
        $region24: #{tpu_custom_call.1} parent=11 // pred_fallthru
          _
        // Predicated region
        $region25: #{tpu_custom_call.1} parent=11 // pred_check
          %p198 = pneg %p148
        $region26: #{tpu_custom_call.1} parent=11 // pred_check_branch
          %200 = sbr.rel (%p198) target = $region28
        $region27: #{tpu_custom_call.1} parent=11 // pred_region
          _
        $region28: #{tpu_custom_call.1} parent=11 // pred_fallthru
          _
      $region12: #{tpu_custom_call.1} parent=5 // pred_fallthru
        _
      %p201 = scmp.lt.s32.totalorder %s12, 2
      // Predicated region
      $region29: #{tpu_custom_call.1} parent=5 // pred_check
        %p202 = pneg %p201
      $region30: #{tpu_custom_call.1} parent=5 // pred_check_branch
        %204 = sbr.rel (%p202) target = $region32
      $region31: #{tpu_custom_call.1} parent=5 // pred_region
        // Predicated region
        $region33: #{tpu_custom_call.1} parent=31 // pred_check
          %p205 = pneg %p32
        $region34: #{tpu_custom_call.1} parent=31 // pred_check_branch
          %207 = sbr.rel (%p205) target = $region36
        $region35: #{tpu_custom_call.1} parent=31 // pred_region
          %s208 = smul.u32 14, %s12
          %s209 = ssub.s32 25, %s208
          %p210 = scmp.lt.s32.totalorder %s209, 14
          %s211 = scalar_select %p210, %s209, 14
          %s212 = smul.u32 128, %s211
          %p213 = scmp.lt.s32.totalorder %s208, 24
          %s214 = scalar_select %p213, %s208, 24
          %s215 = smul.addr %s214, 8
          %s216 = scalar_lea.vmem %s0, %s215
          %s217 = smul.u32 14, %s12
          %s218 = ssub.s32 25, %s217
          %p219 = scmp.lt.s32.totalorder %s218, 14
          %s220 = scalar_select %p219, %s218, 14
          %s221 = smul.u32 128, %s220
        $region36: #{tpu_custom_call.1} parent=31 // pred_fallthru
          _
        // Predicated region
        $region37: #{tpu_custom_call.1} parent=31 // pred_check
          %p222 = pneg %p58
        $region38: #{tpu_custom_call.1} parent=31 // pred_check_branch
          %224 = sbr.rel (%p222) target = $region40
        $region39: #{tpu_custom_call.1} parent=31 // pred_region
          %s225 = smul.u32 14, %s12
          %s226 = ssub.s32 25, %s225
          %p227 = scmp.lt.s32.totalorder %s226, 14
          %s228 = scalar_select %p227, %s226, 14
          %s229 = smul.u32 64, %s228
          %p230 = scmp.lt.s32.totalorder %s225, 24
          %s231 = scalar_select %p230, %s225, 24
          %s232 = smul.addr %s231, 4
          %s233 = scalar_lea.vmem %s1, %s232
          %s234 = smul.u32 14, %s12
          %s235 = ssub.s32 25, %s234
          %p236 = scmp.lt.s32.totalorder %s235, 14
          %s237 = scalar_select %p236, %s235, 14
          %s238 = smul.u32 64, %s237
        $region40: #{tpu_custom_call.1} parent=31 // pred_fallthru
          _
      $region32: #{tpu_custom_call.1} parent=5 // pred_fallthru
        _
      %p239 = scmp.le.s32.totalorder 1, %s12
      %p240 = scmp.lt.s32.totalorder %s12, 3
      %p241 = pnand %p239, %p240
      %p242 = pneg %p241
      // Predicated region
      $region41: #{tpu_custom_call.1} parent=5 // pred_check
        _
      $region42: #{tpu_custom_call.1} parent=5 // pred_check_branch
        %244 = sbr.rel (%p241) target = $region44
      $region43: #{tpu_custom_call.1} parent=5 // pred_region
        %s245 = ssub.s32 %s12, 1
        %s246 = smul.u32 14, %s17
        %s247 = ssub.s32 25, %s246
        %p248 = scmp.lt.s32.totalorder %s247, 14
        %s249 = scalar_select %p248, %s247, 14
        %s250 = smul.u32 128, %s249
        %p251 = scmp.lt.s32.totalorder %s246, 24
        %s252 = scalar_select %p251, %s246, 24
        %s253 = smul.addr %s252, 8
        %s254 = scalar_lea.vmem %s0, %s253
        %p255 = pneg %p38
        %p256 = pneg %p35
        %s257 = smul.u32 14, %s17
        %s258 = ssub.s32 25, %s257
        %p259 = scmp.lt.s32.totalorder %s258, 14
        %s260 = scalar_select %p259, %s258, 14
        %s261 = smul.u32 64, %s260
        %p262 = scmp.lt.s32.totalorder %s257, 24
        %s263 = scalar_select %p262, %s257, 24
        %s264 = smul.addr %s263, 4
        %s265 = scalar_lea.vmem %s1, %s264
        %p266 = pneg %p64
        %p267 = pneg %p61
        %p268 = pneg %p85
        %p269 = pneg %p82
        %p270 = pneg %p106
        %p271 = pneg %p103
        %p272 = pneg %p127
        %p273 = pneg %p124
        %p274 = pneg %p148
        %p275 = pneg %p145
        %p276 = pneg %p174
        %p277 = pneg %p171
        %s278 = sand.u32 %s161, 1
        %s279 = sand.u32 %s161, 1
        %s280 = smul.addr %s279, 112
        %s281 = scalar_lea.vmem [#allocation2], %s280
        %s282 = smul.u32 14, %s17
        %s283 = ssub.s32 25, %s282
        %p284 = scmp.lt.s32.totalorder %s283, 14
        %s285 = scalar_select %p284, %s283, 14
        %s286 = smul.u32 128, %s285
        %p287 = scmp.lt.s32.totalorder %s282, 24
        %s288 = scalar_select %p287, %s282, 24
        %s289 = smul.addr %s288, 8
        %s290 = scalar_lea.vmem %s0, %s289
        %s291 = smul.u32 14, %s17
        %s292 = ssub.s32 25, %s291
        %p293 = scmp.lt.s32.totalorder %s292, 14
        %s294 = scalar_select %p293, %s292, 14
        %s295 = smul.u32 128, %s294
        %s296 = smul.u32 14, %s17
        %s297 = ssub.s32 25, %s296
        %p298 = scmp.lt.s32.totalorder %s297, 14
        %s299 = scalar_select %p298, %s297, 14
        %s300 = smul.u32 64, %s299
        %p301 = scmp.lt.s32.totalorder %s296, 24
        %s302 = scalar_select %p301, %s296, 24
        %s303 = smul.addr %s302, 4
        %s304 = scalar_lea.vmem %s1, %s303
        %s305 = smul.u32 14, %s17
        %s306 = ssub.s32 25, %s305
        %p307 = scmp.lt.s32.totalorder %s306, 14
        %s308 = scalar_select %p307, %s306, 14
        %s309 = smul.u32 64, %s308
        %s310 = smul.u32 14, %s17
        %s311 = ssub.s32 25, %s310
        %p312 = scmp.lt.s32.totalorder %s311, 14
        %s313 = scalar_select %p312, %s311, 14
        %s314 = smul.u32 128, %s313
        %v316 = vlaneseq
        %v317 = vand.u32 %v316, 127
        %v318 = vld [vmem:[%s290] sm:$0xff]
        %v319 = vld [vmem:[%s290 + $0x8] sm:$0xff]
        %v320 = vld [vmem:[%s290 + $0x10] sm:$0xff]
        %v321 = vld [vmem:[%s290 + $0x18] sm:$0xff]
        %v322 = vld [vmem:[%s290 + $0x20] sm:$0xff]
        %v323 = vld [vmem:[%s290 + $0x28] sm:$0xff]
        %v324 = vld [vmem:[%s290 + $0x30] sm:$0xff]
        %v325 = vld [vmem:[%s290 + $0x38] sm:$0xff]
        %v326 = vld [vmem:[%s290 + $0x40] sm:$0xff]
        %v327 = vld [vmem:[%s290 + $0x48] sm:$0xff]
        %v328 = vld [vmem:[%s290 + $0x50] sm:$0xff]
        %v329 = vld [vmem:[%s290 + $0x58] sm:$0xff]
        %v330 = vld [vmem:[%s290 + $0x60] sm:$0xff]
        %v331 = vld [vmem:[%s290 + $0x68] sm:$0xff]
        %332 = vset.pattern.permute.xlu0 0
        %333 = vperm.xlu0 %332, %v318
        %v334 = vpop.permute.xlu0 %333
        %335 = vset.pattern.permute.xlu0 0
        %336 = vperm.xlu0 %335, %v319
        %v337 = vpop.permute.xlu0 %336
        %338 = vset.pattern.permute.xlu0 0
        %339 = vperm.xlu0 %338, %v320
        %v340 = vpop.permute.xlu0 %339
        %341 = vset.pattern.permute.xlu0 0
        %342 = vperm.xlu0 %341, %v321
        %v343 = vpop.permute.xlu0 %342
        %344 = vset.pattern.permute.xlu0 0
        %345 = vperm.xlu0 %344, %v322
        %v346 = vpop.permute.xlu0 %345
        %347 = vset.pattern.permute.xlu0 0
        %348 = vperm.xlu0 %347, %v323
        %v349 = vpop.permute.xlu0 %348
        %350 = vset.pattern.permute.xlu0 0
        %351 = vperm.xlu0 %350, %v324
        %v352 = vpop.permute.xlu0 %351
        %353 = vset.pattern.permute.xlu0 0
        %354 = vperm.xlu0 %353, %v325
        %v355 = vpop.permute.xlu0 %354
        %356 = vset.pattern.permute.xlu0 0
        %357 = vperm.xlu0 %356, %v326
        %v358 = vpop.permute.xlu0 %357
        %359 = vset.pattern.permute.xlu0 0
        %360 = vperm.xlu0 %359, %v327
        %v361 = vpop.permute.xlu0 %360
        %362 = vset.pattern.permute.xlu0 0
        %363 = vperm.xlu0 %362, %v328
        %v364 = vpop.permute.xlu0 %363
        %365 = vset.pattern.permute.xlu0 0
        %366 = vperm.xlu0 %365, %v329
        %v367 = vpop.permute.xlu0 %366
        %368 = vset.pattern.permute.xlu0 0
        %369 = vperm.xlu0 %368, %v330
        %v370 = vpop.permute.xlu0 %369
        %371 = vset.pattern.permute.xlu0 0
        %372 = vperm.xlu0 %371, %v331
        %v373 = vpop.permute.xlu0 %372
        %vm374 = vcmp.eq.s32.totalorder %v317, %v334
        %vm375 = vcmp.eq.s32.totalorder %v317, %v337
        %vm376 = vcmp.eq.s32.totalorder %v317, %v340
        %vm377 = vcmp.eq.s32.totalorder %v317, %v343
        %vm378 = vcmp.eq.s32.totalorder %v317, %v346
        %vm379 = vcmp.eq.s32.totalorder %v317, %v349
        %vm380 = vcmp.eq.s32.totalorder %v317, %v352
        %vm381 = vcmp.eq.s32.totalorder %v317, %v355
        %vm382 = vcmp.eq.s32.totalorder %v317, %v358
        %vm383 = vcmp.eq.s32.totalorder %v317, %v361
        %vm384 = vcmp.eq.s32.totalorder %v317, %v364
        %vm385 = vcmp.eq.s32.totalorder %v317, %v367
        %vm386 = vcmp.eq.s32.totalorder %v317, %v370
        %vm387 = vcmp.eq.s32.totalorder %v317, %v373
        %v388 = vsel %vm374, 1, 0
        %v389 = vsel %vm375, 1, 0
        %v390 = vsel %vm376, 1, 0
        %v391 = vsel %vm377, 1, 0
        %v392 = vsel %vm378, 1, 0
        %v393 = vsel %vm379, 1, 0
        %v394 = vsel %vm380, 1, 0
        %v395 = vsel %vm381, 1, 0
        %v396 = vsel %vm382, 1, 0
        %v397 = vsel %vm383, 1, 0
        %v398 = vsel %vm384, 1, 0
        %v399 = vsel %vm385, 1, 0
        %v400 = vsel %vm386, 1, 0
        %v401 = vsel %vm387, 1, 0
        %v402 = vcvt.s32.f32 %v388
        %v403 = vcvt.s32.f32 %v389
        %v404 = vcvt.s32.f32 %v390
        %v405 = vcvt.s32.f32 %v391
        %v406 = vcvt.s32.f32 %v392
        %v407 = vcvt.s32.f32 %v393
        %v408 = vcvt.s32.f32 %v394
        %v409 = vcvt.s32.f32 %v395
        %v410 = vcvt.s32.f32 %v396
        %v411 = vcvt.s32.f32 %v397
        %v412 = vcvt.s32.f32 %v398
        %v413 = vcvt.s32.f32 %v399
        %v414 = vcvt.s32.f32 %v400
        %v415 = vcvt.s32.f32 %v401
        %v416 = vpack.c.bf16 %v403, %v402
        %v417 = vpack.c.bf16 %v405, %v404
        %v418 = vpack.c.bf16 %v407, %v406
        %v419 = vpack.c.bf16 %v409, %v408
        %v420 = vpack.c.bf16 %v411, %v410
        %v421 = vpack.c.bf16 %v413, %v412
        %v422 = vpack.c.bf16 %v415, %v414
        %v423 = vld [vmem:[%s2] sm:$0xf]
        %v424 = vld [vmem:[%s2 + $0x4] sm:$0xf]
        %v425 = vld [vmem:[%s2 + $0x8] sm:$0xf]
        %v426 = vld [vmem:[%s2 + $0xc] sm:$0xf]
        %v427 = vld [vmem:[%s2 + $0x10] sm:$0xf]
        %v428 = vld [vmem:[%s2 + $0x14] sm:$0xf]
        %v429 = vld [vmem:[%s2 + $0x18] sm:$0xf]
        %v430 = vld [vmem:[%s2 + $0x1c] sm:$0xf]
        %v439 = vunpack.c.l.b16 %v423
        %v440 = vunpack.c.l.b16 %v424
        %v441 = vunpack.c.l.b16 %v425
        %v442 = vunpack.c.l.b16 %v426
        %v443 = vunpack.c.l.b16 %v427
        %v444 = vunpack.c.l.b16 %v428
        %v445 = vunpack.c.l.b16 %v429
        %v446 = vunpack.c.l.b16 %v430
        %v447 = vpack.c.b16 %v440, %v439
        %v448 = vpack.c.b16 %v442, %v441
        %v449 = vpack.c.b16 %v444, %v443
        %v450 = vpack.c.b16 %v446, %v445
        %vm455 = vcmask 523264
        %v457 = vsel %vm455, %v416, 0
        %v460 = vsel %vm455, %v417, 0
        %v463 = vsel %vm455, %v418, 0
        %v466 = vsel %vm455, %v419, 0
        %v469 = vsel %vm455, %v420, 0
        %v472 = vsel %vm455, %v421, 0
        %v475 = vsel %vm455, %v422, 0
        %477 = vmatprep.subr.bf16.mxu0 0
        %478 = vmatpush1.bf16.msra.mxu0 %v447
        %479 = vmatprep.subr.bf16.mxu0 0
        %480 = vmatpush1.bf16.msra.mxu0 %v448
        %481 = vmatprep.subr.bf16.mxu0 0
        %482 = vmatpush1.bf16.msra.mxu0 %v449
        %483 = vmatprep.subr.bf16.mxu0 0
        %484 = vmatpush1.bf16.msra.mxu0 %v450
        %485 = vmatprep.subr.bf16.mxu0 0
        %486 = vmatpush1.bf16.msra.mxu0 0
        %487 = vmatprep.subr.bf16.mxu0 0
        %488 = vmatpush1.bf16.msra.mxu0 0
        %489 = vmatprep.subr.bf16.mxu0 0
        %490 = vmatpush1.bf16.msra.mxu0 0
        %491 = vmatprep.subr.bf16.mxu0 0
        %492 = vmatpush1.bf16.msra.mxu0 0
        %493 = vmatprep.subr.bf16.mxu0 0
        %494 = vmatpush1.bf16.msra.mxu0 0
        %495 = vmatprep.subr.bf16.mxu0 0
        %496 = vmatpush1.bf16.msra.mxu0 0
        %497 = vmatprep.subr.bf16.mxu0 0
        %498 = vmatpush1.bf16.msra.mxu0 0
        %499 = vmatprep.subr.bf16.mxu0 0
        %500 = vmatpush1.bf16.msra.mxu0 0
        %501 = vmatprep.subr.bf16.mxu0 0
        %502 = vmatpush1.bf16.msra.mxu0 0
        %503 = vmatprep.subr.bf16.mxu0 0
        %504 = vmatpush1.bf16.msra.mxu0 0
        %505 = vmatprep.subr.bf16.mxu0 0
        %506 = vmatpush1.bf16.msra.mxu0 0
        %507 = vmatprep.subr.bf16.mxu0 0
        %508 = vmatpush1.bf16.msra.mxu0 0
        %509 = vmatprep.mubr.bf16.mxu0 0
        %510 = vmatmul.mubr.bf16.gmra.mrb[0].mxu0 %v457
        %v511 = vpop.f32.mrb[0].mxu0
        %v512 = vadd.f32 0.0, %v511
        %v513 = vpop.f32.mrb[0].mxu0
        %v514 = vpop.f32.mrb[0].mxu0
        %v515 = vadd.f32 0.0, %v514
        %v516 = vpop.f32.mrb[0].mxu0
        %517 = vmatprep.mubr.bf16.mxu0 0
        %518 = vmatmul.mubr.bf16.gmra.mrb[0].mxu0 %v460
        %v519 = vpop.f32.mrb[0].mxu0
        %v520 = vadd.f32 0.0, %v519
        %v521 = vpop.f32.mrb[0].mxu0
        %v522 = vpop.f32.mrb[0].mxu0
        %v523 = vadd.f32 0.0, %v522
        %v524 = vpop.f32.mrb[0].mxu0
        %525 = vmatprep.mubr.bf16.mxu0 0
        %526 = vmatmul.mubr.bf16.gmra.mrb[0].mxu0 %v463
        %v527 = vpop.f32.mrb[0].mxu0
        %v528 = vadd.f32 0.0, %v527
        %v529 = vpop.f32.mrb[0].mxu0
        %v530 = vpop.f32.mrb[0].mxu0
        %v531 = vadd.f32 0.0, %v530
        %v532 = vpop.f32.mrb[0].mxu0
        %533 = vmatprep.mubr.bf16.mxu0 0
        %534 = vmatmul.mubr.bf16.gmra.mrb[0].mxu0 %v466
        %v535 = vpop.f32.mrb[0].mxu0
        %v536 = vadd.f32 0.0, %v535
        %v537 = vpop.f32.mrb[0].mxu0
        %v538 = vpop.f32.mrb[0].mxu0
        %v539 = vadd.f32 0.0, %v538
        %v540 = vpop.f32.mrb[0].mxu0
        %541 = vmatprep.mubr.bf16.mxu0 0
        %542 = vmatmul.mubr.bf16.gmra.mrb[0].mxu0 %v469
        %v543 = vpop.f32.mrb[0].mxu0
        %v544 = vadd.f32 0.0, %v543
        %v545 = vpop.f32.mrb[0].mxu0
        %v546 = vpop.f32.mrb[0].mxu0
        %v547 = vadd.f32 0.0, %v546
        %v548 = vpop.f32.mrb[0].mxu0
        %549 = vmatprep.mubr.bf16.mxu0 0
        %550 = vmatmul.mubr.bf16.gmra.mrb[0].mxu0 %v472
        %v551 = vpop.f32.mrb[0].mxu0
        %v552 = vadd.f32 0.0, %v551
        %v553 = vpop.f32.mrb[0].mxu0
        %v554 = vpop.f32.mrb[0].mxu0
        %v555 = vadd.f32 0.0, %v554
        %v556 = vpop.f32.mrb[0].mxu0
        %557 = vmatprep.mubr.bf16.mxu0 0
        %558 = vmatmul.mubr.bf16.gmra.mrb[0].mxu0 %v475
        %v559 = vpop.f32.mrb[0].mxu0
        %v560 = vadd.f32 0.0, %v559
        %v561 = vpop.f32.mrb[0].mxu0
        %v562 = vpop.f32.mrb[0].mxu0
        %v563 = vadd.f32 0.0, %v562
        %v564 = vpop.f32.mrb[0].mxu0
        %565 = vdwg.mxu0
        %v566 = vpack.c.bf16 %v515, %v512
        %v567 = vpack.c.bf16 %v523, %v520
        %v568 = vpack.c.bf16 %v531, %v528
        %v569 = vpack.c.bf16 %v539, %v536
        %v570 = vpack.c.bf16 %v547, %v544
        %v571 = vpack.c.bf16 %v555, %v552
        %v572 = vpack.c.bf16 %v563, %v560
        %v573 = vld [vmem:[%s304] sm:$0xf]
        %v574 = vld [vmem:[%s304 + $0x4] sm:$0xf]
        %v575 = vld [vmem:[%s304 + $0x8] sm:$0xf]
        %v576 = vld [vmem:[%s304 + $0xc] sm:$0xf]
        %v577 = vld [vmem:[%s304 + $0x10] sm:$0xf]
        %v578 = vld [vmem:[%s304 + $0x14] sm:$0xf]
        %v579 = vld [vmem:[%s304 + $0x18] sm:$0xf]
        %v580 = vld [vmem:[%s304 + $0x1c] sm:$0xf]
        %v581 = vld [vmem:[%s304 + $0x20] sm:$0xf]
        %v582 = vld [vmem:[%s304 + $0x24] sm:$0xf]
        %v583 = vld [vmem:[%s304 + $0x28] sm:$0xf]
        %v584 = vld [vmem:[%s304 + $0x2c] sm:$0xf]
        %v585 = vld [vmem:[%s304 + $0x30] sm:$0xf]
        %v586 = vld [vmem:[%s304 + $0x34] sm:$0xf]
        %v587 = vld [vmem:[%s3] sm:$0xf]
        %v588 = vld [vmem:[%s3 + $0x4] sm:$0xf]
        %v589 = vld [vmem:[%s3 + $0x8] sm:$0xf]
        %v590 = vld [vmem:[%s3 + $0xc] sm:$0xf]
        %v591 = vld [vmem:[%s4] sm:$0xf]
        %v592 = vld [vmem:[%s4 + $0x4] sm:$0xf]
        %v593 = vld [vmem:[%s4 + $0x8] sm:$0xf]
        %v594 = vld [vmem:[%s4 + $0xc] sm:$0xf]
        %v599 = vunpack.c.l.b16 %v591
        %v600 = vunpack.c.l.b16 %v592
        %v601 = vunpack.c.l.b16 %v593
        %v602 = vunpack.c.l.b16 %v594
        %v603 = vpack.c.b16 %v600, %v599
        %v604 = vpack.c.b16 %v602, %v601
        %vm607 = vcmask 261120
        %v609 = vsel %vm607, %v566, 0
        %v612 = vsel %vm607, %v567, 0
        %v615 = vsel %vm607, %v568, 0
        %v618 = vsel %vm607, %v569, 0
        %v621 = vsel %vm607, %v570, 0
        %v624 = vsel %vm607, %v571, 0
        %v627 = vsel %vm607, %v572, 0
        %629 = vmatprep.subr.bf16.mxu0 0
        %630 = vmatpush1.bf16.msra.mxu0 %v603
        %631 = vmatprep.subr.bf16.mxu0 0
        %632 = vmatpush1.bf16.msra.mxu0 %v604
        %633 = vmatprep.subr.bf16.mxu0 0
        %634 = vmatpush1.bf16.msra.mxu0 0
        %635 = vmatprep.subr.bf16.mxu0 0
        %636 = vmatpush1.bf16.msra.mxu0 0
        %637 = vmatprep.subr.bf16.mxu0 0
        %638 = vmatpush1.bf16.msra.mxu0 0
        %639 = vmatprep.subr.bf16.mxu0 0
        %640 = vmatpush1.bf16.msra.mxu0 0
        %641 = vmatprep.subr.bf16.mxu0 0
        %642 = vmatpush1.bf16.msra.mxu0 0
        %643 = vmatprep.subr.bf16.mxu0 0
        %644 = vmatpush1.bf16.msra.mxu0 0
        %645 = vmatprep.subr.bf16.mxu0 0
        %646 = vmatpush1.bf16.msra.mxu0 0
        %647 = vmatprep.subr.bf16.mxu0 0
        %648 = vmatpush1.bf16.msra.mxu0 0
        %649 = vmatprep.subr.bf16.mxu0 0
        %650 = vmatpush1.bf16.msra.mxu0 0
        %651 = vmatprep.subr.bf16.mxu0 0
        %652 = vmatpush1.bf16.msra.mxu0 0
        %653 = vmatprep.subr.bf16.mxu0 0
        %654 = vmatpush1.bf16.msra.mxu0 0
        %655 = vmatprep.subr.bf16.mxu0 0
        %656 = vmatpush1.bf16.msra.mxu0 0
        %657 = vmatprep.subr.bf16.mxu0 0
        %658 = vmatpush1.bf16.msra.mxu0 0
        %659 = vmatprep.subr.bf16.mxu0 0
        %660 = vmatpush1.bf16.msra.mxu0 0
        %661 = vmatprep.mubr.bf16.mxu0 0
        %662 = vmatmul.mubr.bf16.gmra.mrb[0].mxu0 %v609
        %v663 = vpop.f32.mrb[0].mxu0
        %v664 = vadd.f32 0.0, %v663
        %v665 = vpop.f32.mrb[0].mxu0
        %v666 = vpop.f32.mrb[0].mxu0
        %v667 = vadd.f32 0.0, %v666
        %v668 = vpop.f32.mrb[0].mxu0
        %669 = vmatprep.mubr.bf16.mxu0 0
        %670 = vmatmul.mubr.bf16.gmra.mrb[0].mxu0 %v612
        %v671 = vpop.f32.mrb[0].mxu0
        %v672 = vadd.f32 0.0, %v671
        %v673 = vpop.f32.mrb[0].mxu0
        %v674 = vpop.f32.mrb[0].mxu0
        %v675 = vadd.f32 0.0, %v674
        %v676 = vpop.f32.mrb[0].mxu0
        %677 = vmatprep.mubr.bf16.mxu0 0
        %678 = vmatmul.mubr.bf16.gmra.mrb[0].mxu0 %v615
        %v679 = vpop.f32.mrb[0].mxu0
        %v680 = vadd.f32 0.0, %v679
        %v681 = vpop.f32.mrb[0].mxu0
        %v682 = vpop.f32.mrb[0].mxu0
        %v683 = vadd.f32 0.0, %v682
        %v684 = vpop.f32.mrb[0].mxu0
        %685 = vmatprep.mubr.bf16.mxu0 0
        %686 = vmatmul.mubr.bf16.gmra.mrb[0].mxu0 %v618
        %v687 = vpop.f32.mrb[0].mxu0
        %v688 = vadd.f32 0.0, %v687
        %v689 = vpop.f32.mrb[0].mxu0
        %v690 = vpop.f32.mrb[0].mxu0
        %v691 = vadd.f32 0.0, %v690
        %v692 = vpop.f32.mrb[0].mxu0
        %693 = vmatprep.mubr.bf16.mxu0 0
        %694 = vmatmul.mubr.bf16.gmra.mrb[0].mxu0 %v621
        %v695 = vpop.f32.mrb[0].mxu0
        %v696 = vadd.f32 0.0, %v695
        %v697 = vpop.f32.mrb[0].mxu0
        %v698 = vpop.f32.mrb[0].mxu0
        %v699 = vadd.f32 0.0, %v698
        %v700 = vpop.f32.mrb[0].mxu0
        %701 = vmatprep.mubr.bf16.mxu0 0
        %702 = vmatmul.mubr.bf16.gmra.mrb[0].mxu0 %v624
        %v703 = vpop.f32.mrb[0].mxu0
        %v704 = vadd.f32 0.0, %v703
        %v705 = vpop.f32.mrb[0].mxu0
        %v706 = vpop.f32.mrb[0].mxu0
        %v707 = vadd.f32 0.0, %v706
        %v708 = vpop.f32.mrb[0].mxu0
        %709 = vmatprep.mubr.bf16.mxu0 0
        %710 = vmatmul.mubr.bf16.gmra.mrb[0].mxu0 %v627
        %v711 = vpop.f32.mrb[0].mxu0
        %v712 = vadd.f32 0.0, %v711
        %v713 = vpop.f32.mrb[0].mxu0
        %v714 = vpop.f32.mrb[0].mxu0
        %v715 = vadd.f32 0.0, %v714
        %v716 = vpop.f32.mrb[0].mxu0
        %717 = vdwg.mxu0
        %v732 = vunpack.c.l.b16 %v573
        %v733 = vunpack.c.l.b16 %v574
        %v734 = vunpack.c.l.b16 %v575
        %v735 = vunpack.c.l.b16 %v576
        %v736 = vunpack.c.l.b16 %v577
        %v737 = vunpack.c.l.b16 %v578
        %v738 = vunpack.c.l.b16 %v579
        %v739 = vunpack.c.l.b16 %v580
        %v740 = vunpack.c.l.b16 %v581
        %v741 = vunpack.c.l.b16 %v582
        %v742 = vunpack.c.l.b16 %v583
        %v743 = vunpack.c.l.b16 %v584
        %v744 = vunpack.c.l.b16 %v585
        %v745 = vunpack.c.l.b16 %v586
        %v746 = vpack.c.b16 %v733, %v732
        %v747 = vpack.c.b16 %v735, %v734
        %v748 = vpack.c.b16 %v737, %v736
        %v749 = vpack.c.b16 %v739, %v738
        %v750 = vpack.c.b16 %v741, %v740
        %v751 = vpack.c.b16 %v743, %v742
        %v752 = vpack.c.b16 %v745, %v744
        %v757 = vunpack.c.l.b16 %v587
        %v758 = vunpack.c.l.b16 %v588
        %v759 = vunpack.c.l.b16 %v589
        %v760 = vunpack.c.l.b16 %v590
        %v761 = vpack.c.b16 %v758, %v757
        %v762 = vpack.c.b16 %v760, %v759
        %v766 = vsel %vm607, %v746, 0
        %v769 = vsel %vm607, %v747, 0
        %v772 = vsel %vm607, %v748, 0
        %v775 = vsel %vm607, %v749, 0
        %v778 = vsel %vm607, %v750, 0
        %v781 = vsel %vm607, %v751, 0
        %v784 = vsel %vm607, %v752, 0
        %786 = vmatprep.subr.bf16.mxu0 0
        %787 = vmatpush1.bf16.msra.mxu0 %v761
        %788 = vmatprep.subr.bf16.mxu0 0
        %789 = vmatpush1.bf16.msra.mxu0 %v762
        %790 = vmatprep.subr.bf16.mxu0 0
        %791 = vmatpush1.bf16.msra.mxu0 0
        %792 = vmatprep.subr.bf16.mxu0 0
        %793 = vmatpush1.bf16.msra.mxu0 0
        %794 = vmatprep.subr.bf16.mxu0 0
        %795 = vmatpush1.bf16.msra.mxu0 0
        %796 = vmatprep.subr.bf16.mxu0 0
        %797 = vmatpush1.bf16.msra.mxu0 0
        %798 = vmatprep.subr.bf16.mxu0 0
        %799 = vmatpush1.bf16.msra.mxu0 0
        %800 = vmatprep.subr.bf16.mxu0 0
        %801 = vmatpush1.bf16.msra.mxu0 0
        %802 = vmatprep.subr.bf16.mxu0 0
        %803 = vmatpush1.bf16.msra.mxu0 0
        %804 = vmatprep.subr.bf16.mxu0 0
        %805 = vmatpush1.bf16.msra.mxu0 0
        %806 = vmatprep.subr.bf16.mxu0 0
        %807 = vmatpush1.bf16.msra.mxu0 0
        %808 = vmatprep.subr.bf16.mxu0 0
        %809 = vmatpush1.bf16.msra.mxu0 0
        %810 = vmatprep.subr.bf16.mxu0 0
        %811 = vmatpush1.bf16.msra.mxu0 0
        %812 = vmatprep.subr.bf16.mxu0 0
        %813 = vmatpush1.bf16.msra.mxu0 0
        %814 = vmatprep.subr.bf16.mxu0 0
        %815 = vmatpush1.bf16.msra.mxu0 0
        %816 = vmatprep.subr.bf16.mxu0 0
        %817 = vmatpush1.bf16.msra.mxu0 0
        %818 = vmatprep.mubr.bf16.mxu0 0
        %819 = vmatmul.mubr.bf16.gmra.mrb[0].mxu0 %v766
        %v820 = vpop.f32.mrb[0].mxu0
        %v821 = vadd.f32 %v664, %v820
        %v822 = vpop.f32.mrb[0].mxu0
        %v823 = vpop.f32.mrb[0].mxu0
        %v824 = vadd.f32 %v667, %v823
        %v825 = vpop.f32.mrb[0].mxu0
        %826 = vmatprep.mubr.bf16.mxu0 0
        %827 = vmatmul.mubr.bf16.gmra.mrb[0].mxu0 %v769
        %v828 = vpop.f32.mrb[0].mxu0
        %v829 = vadd.f32 %v672, %v828
        %v830 = vpop.f32.mrb[0].mxu0
        %v831 = vpop.f32.mrb[0].mxu0
        %v832 = vadd.f32 %v675, %v831
        %v833 = vpop.f32.mrb[0].mxu0
        %834 = vmatprep.mubr.bf16.mxu0 0
        %835 = vmatmul.mubr.bf16.gmra.mrb[0].mxu0 %v772
        %v836 = vpop.f32.mrb[0].mxu0
        %v837 = vadd.f32 %v680, %v836
        %v838 = vpop.f32.mrb[0].mxu0
        %v839 = vpop.f32.mrb[0].mxu0
        %v840 = vadd.f32 %v683, %v839
        %v841 = vpop.f32.mrb[0].mxu0
        %842 = vmatprep.mubr.bf16.mxu0 0
        %843 = vmatmul.mubr.bf16.gmra.mrb[0].mxu0 %v775
        %v844 = vpop.f32.mrb[0].mxu0
        %v845 = vadd.f32 %v688, %v844
        %v846 = vpop.f32.mrb[0].mxu0
        %v847 = vpop.f32.mrb[0].mxu0
        %v848 = vadd.f32 %v691, %v847
        %v849 = vpop.f32.mrb[0].mxu0
        %850 = vmatprep.mubr.bf16.mxu0 0
        %851 = vmatmul.mubr.bf16.gmra.mrb[0].mxu0 %v778
        %v852 = vpop.f32.mrb[0].mxu0
        %v853 = vadd.f32 %v696, %v852
        %v854 = vpop.f32.mrb[0].mxu0
        %v855 = vpop.f32.mrb[0].mxu0
        %v856 = vadd.f32 %v699, %v855
        %v857 = vpop.f32.mrb[0].mxu0
        %858 = vmatprep.mubr.bf16.mxu0 0
        %859 = vmatmul.mubr.bf16.gmra.mrb[0].mxu0 %v781
        %v860 = vpop.f32.mrb[0].mxu0
        %v861 = vadd.f32 %v704, %v860
        %v862 = vpop.f32.mrb[0].mxu0
        %v863 = vpop.f32.mrb[0].mxu0
        %v864 = vadd.f32 %v707, %v863
        %v865 = vpop.f32.mrb[0].mxu0
        %866 = vmatprep.mubr.bf16.mxu0 0
        %867 = vmatmul.mubr.bf16.gmra.mrb[0].mxu0 %v784
        %v868 = vpop.f32.mrb[0].mxu0
        %v869 = vadd.f32 %v712, %v868
        %v870 = vpop.f32.mrb[0].mxu0
        %v871 = vpop.f32.mrb[0].mxu0
        %v872 = vadd.f32 %v715, %v871
        %v873 = vpop.f32.mrb[0].mxu0
        %874 = vdwg.mxu0
        %v875 = vld [vmem:[%s5] sm:$0x1]
        %v877 = vlaneseq
        %v878 = vshrl.u32 %v877, 7
        %v879 = vsub.s32 0, %v878
        %v880 = vrot.slane %v875, %v879
        %v882 = vadd.f32 %v821, %v880
        %v883 = vadd.f32 %v824, %v880
        %v884 = vadd.f32 %v829, %v880
        %v885 = vadd.f32 %v832, %v880
        %v886 = vadd.f32 %v837, %v880
        %v887 = vadd.f32 %v840, %v880
        %v888 = vadd.f32 %v845, %v880
        %v889 = vadd.f32 %v848, %v880
        %v890 = vadd.f32 %v853, %v880
        %v891 = vadd.f32 %v856, %v880
        %v892 = vadd.f32 %v861, %v880
        %v893 = vadd.f32 %v864, %v880
        %v894 = vadd.f32 %v869, %v880
        %v895 = vadd.f32 %v872, %v880
        %896 = vst.msk [vmem:[%s281] sm:$0xff] %vm607, %v882
        %897 = vst.msk [vmem:[%s281 + $0x8] sm:$0xff] %vm607, %v883
        %898 = vst.msk [vmem:[%s281 + $0x10] sm:$0xff] %vm607, %v884
        %899 = vst.msk [vmem:[%s281 + $0x18] sm:$0xff] %vm607, %v885
        %900 = vst.msk [vmem:[%s281 + $0x20] sm:$0xff] %vm607, %v886
        %901 = vst.msk [vmem:[%s281 + $0x28] sm:$0xff] %vm607, %v887
        %902 = vst.msk [vmem:[%s281 + $0x30] sm:$0xff] %vm607, %v888
        %903 = vst.msk [vmem:[%s281 + $0x38] sm:$0xff] %vm607, %v889
        %904 = vst.msk [vmem:[%s281 + $0x40] sm:$0xff] %vm607, %v890
        %905 = vst.msk [vmem:[%s281 + $0x48] sm:$0xff] %vm607, %v891
        %906 = vst.msk [vmem:[%s281 + $0x50] sm:$0xff] %vm607, %v892
        %907 = vst.msk [vmem:[%s281 + $0x58] sm:$0xff] %vm607, %v893
        %908 = vst.msk [vmem:[%s281 + $0x60] sm:$0xff] %vm607, %v894
        %909 = vst.msk [vmem:[%s281 + $0x68] sm:$0xff] %vm607, %v895
        %s910 = sand.u32 %s161, 1
        %s911 = sand.u32 %s161, 1
        %s912 = smul.addr %s911, 112
        %s913 = scalar_lea.vmem [#allocation2], %s912
        // Predicated region
        $region45: #{tpu_custom_call.1} parent=43 // pred_check
          %p914 = pneg %p171
        $region46: #{tpu_custom_call.1} parent=43 // pred_check_branch
          %916 = sbr.rel (%p914) target = $region48
        $region47: #{tpu_custom_call.1} parent=43 // pred_region
          %s917 = smul.u32 14, %s17
          %s918 = ssub.s32 25, %s917
          %p919 = scmp.lt.s32.totalorder %s918, 14
          %s920 = scalar_select %p919, %s918, 14
          %s921 = smul.u32 128, %s920
          %p922 = scmp.ne.s32.totalorder 0, %s921
          %s923 = smul.addr %s917, 8
          %s924 = scalar_lea.vmem %s6, %s923
          // Predicated region
          $region49: #{tpu_custom_call.1} parent=47 // pred_check
            %p925 = pneg %p922
          $region50: #{tpu_custom_call.1} parent=47 // pred_check_branch
            %927 = sbr.rel (%p925) target = $region52
          $region51: #{tpu_custom_call.1} parent=47 // pred_region
            // Predicated region
            $region53: #{tpu_custom_call.1} parent=51 // pred_check
              _
            $region54: #{tpu_custom_call.1} parent=51 // pred_check_branch
              %929 = sbr.rel (0) target = $region56
            $region55: #{tpu_custom_call.1} parent=51 // pred_region
              // Predicated region
              $region75: #{tpu_custom_call.1} parent=55 // pred_check
                _
              $region76: #{tpu_custom_call.1} parent=55 // pred_check_branch
                %1005 = sbr.rel (0) target = $region78
              $region77: #{tpu_custom_call.1} parent=55 // pred_region
                %s1006 = sdiv.u32.pop %s920, 14
                %s1007 = srem.u32.pop %s920, 14
                // While loop
                $region79: #{tpu_custom_call.1} parent=77 // loop_pre_header
                  _
                $region80: #{tpu_custom_call.1} parent=77 // loop_header
                  %s1009 = sphi 0, %s1011
                  %p1010 = scmp.ge.s32.totalorder %s1009, %s1006
                  %s1014 = sphi 0, %s1047
                  %s1015 = sphi %s913, %s1050
                  %s1016 = sphi %s924, %s1051
                $region81: #{tpu_custom_call.1} parent=77 // loop_header_branch
                  %1013 = sbr.rel (%p1010) target = $region85
                $region82: #{tpu_custom_call.1} parent=77 // loop_body
                  %v1017 = vld [vmem:[%s1015] sm:$0xff]
                  %1018 = vst [vmem:[%s1016] sm:$0xff] %v1017
                  %v1019 = vld [vmem:[%s1015 + $0x8] sm:$0xff]
                  %1020 = vst [vmem:[%s1016 + $0x8] sm:$0xff] %v1019
                  %v1021 = vld [vmem:[%s1015 + $0x10] sm:$0xff]
                  %1022 = vst [vmem:[%s1016 + $0x10] sm:$0xff] %v1021
                  %v1023 = vld [vmem:[%s1015 + $0x18] sm:$0xff]
                  %1024 = vst [vmem:[%s1016 + $0x18] sm:$0xff] %v1023
                  %v1025 = vld [vmem:[%s1015 + $0x20] sm:$0xff]
                  %1026 = vst [vmem:[%s1016 + $0x20] sm:$0xff] %v1025
                  %v1027 = vld [vmem:[%s1015 + $0x28] sm:$0xff]
                  %1028 = vst [vmem:[%s1016 + $0x28] sm:$0xff] %v1027
                  %v1029 = vld [vmem:[%s1015 + $0x30] sm:$0xff]
                  %1030 = vst [vmem:[%s1016 + $0x30] sm:$0xff] %v1029
                  %v1031 = vld [vmem:[%s1015 + $0x38] sm:$0xff]
                  %1032 = vst [vmem:[%s1016 + $0x38] sm:$0xff] %v1031
                  %v1033 = vld [vmem:[%s1015 + $0x40] sm:$0xff]
                  %1034 = vst [vmem:[%s1016 + $0x40] sm:$0xff] %v1033
                  %v1035 = vld [vmem:[%s1015 + $0x48] sm:$0xff]
                  %1036 = vst [vmem:[%s1016 + $0x48] sm:$0xff] %v1035
                  %v1037 = vld [vmem:[%s1015 + $0x50] sm:$0xff]
                  %1038 = vst [vmem:[%s1016 + $0x50] sm:$0xff] %v1037
                  %v1039 = vld [vmem:[%s1015 + $0x58] sm:$0xff]
                  %1040 = vst [vmem:[%s1016 + $0x58] sm:$0xff] %v1039
                  %v1041 = vld [vmem:[%s1015 + $0x60] sm:$0xff]
                  %1042 = vst [vmem:[%s1016 + $0x60] sm:$0xff] %v1041
                  %v1043 = vld [vmem:[%s1015 + $0x68] sm:$0xff]
                  %1044 = vst [vmem:[%s1016 + $0x68] sm:$0xff] %v1043
                  %s1045 = sadd.s32 1, %s1014
                  %p1046 = scmp.ge.s32.totalorder %s1045, %s1006
                  %s1047 = scalar_select %p1046, 0, %s1045
                  %s1048 = smul.u32 %s1047, 112
                  %s1049 = smul.u32 %s1047, 112
                  %s1050 = scalar_lea.vmem %s913, %s1048 [#allocation2]
                  %s1051 = scalar_lea.vmem %s924, %s1049
                $region83: #{tpu_custom_call.1} parent=77 // loop_footer
                  %s1011 = sadd.s32 %s1009, 1
                $region84: #{tpu_custom_call.1} parent=77 // loop_footer_branch
                  %1008 = sbr.rel target = $region80
                $region85: #{tpu_custom_call.1} parent=77 // loop_exit
                  _
                %s1052 = sdiv.u32.pop %s920, 14
                %s1053 = srem.u32.pop %s920, 14
                %s1054 = smul.u32 %s1052, 14
                %s1055 = smul.u32 8, %s1054
                %s1056 = scalar_lea.vmem %s913, %s1055 [#allocation2]
                %s1057 = smul.u32 8, %s1054
                %s1058 = scalar_lea.vmem %s924, %s1057
                // While loop
                $region86: #{tpu_custom_call.1} parent=77 // loop_pre_header
                  _
                $region87: #{tpu_custom_call.1} parent=77 // loop_header
                  %s1060 = sphi 0, %s1062
                  %p1061 = scmp.ge.s32.totalorder %s1060, %s1053
                  %s1065 = sphi 0, %s1072
                  %s1066 = sphi %s1056, %s1075
                  %s1067 = sphi %s1058, %s1076
                $region88: #{tpu_custom_call.1} parent=77 // loop_header_branch
                  %1064 = sbr.rel (%p1061) target = $region92
                $region89: #{tpu_custom_call.1} parent=77 // loop_body
                  %v1068 = vld [vmem:[%s1066] sm:$0xff]
                  %1069 = vst [vmem:[%s1067] sm:$0xff] %v1068
                  %s1070 = sadd.s32 1, %s1065
                  %p1071 = scmp.ge.s32.totalorder %s1070, %s1053
                  %s1072 = scalar_select %p1071, 0, %s1070
                  %s1073 = smul.u32 %s1072, 8
                  %s1074 = smul.u32 %s1072, 8
                  %s1075 = scalar_lea.vmem %s1056, %s1073 [#allocation2]
                  %s1076 = scalar_lea.vmem %s1058, %s1074
                $region90: #{tpu_custom_call.1} parent=77 // loop_footer
                  %s1062 = sadd.s32 %s1060, 1
                $region91: #{tpu_custom_call.1} parent=77 // loop_footer_branch
                  %1059 = sbr.rel target = $region87
                $region92: #{tpu_custom_call.1} parent=77 // loop_exit
                  _
              $region78: #{tpu_custom_call.1} parent=55 // pred_fallthru
                _
              // Predicated region
              $region93: #{tpu_custom_call.1} parent=55 // pred_check
                _
              $region94: #{tpu_custom_call.1} parent=55 // pred_check_branch
                %1078 = sbr.rel target = $region96
              $region95: #{tpu_custom_call.1} parent=55 // pred_region
                _
              $region96: #{tpu_custom_call.1} parent=55 // pred_fallthru
                _
            $region56: #{tpu_custom_call.1} parent=51 // pred_fallthru
              _
            // Predicated region
            $region57: #{tpu_custom_call.1} parent=51 // pred_check
              _
            $region58: #{tpu_custom_call.1} parent=51 // pred_check_branch
              %931 = sbr.rel target = $region60
            $region59: #{tpu_custom_call.1} parent=51 // pred_region
              %s933 = sdiv.u32.pop %s920, 14
              %s934 = srem.u32.pop %s920, 14
              // While loop
              $region61: #{tpu_custom_call.1} parent=59 // loop_pre_header
                _
              $region62: #{tpu_custom_call.1} parent=59 // loop_header
                %s936 = sphi 0, %s938
                %p937 = scmp.ge.s32.totalorder %s936, %s933
                %s941 = sphi 0, %s974
                %s942 = sphi %s913, %s977
                %s943 = sphi %s924, %s978
              $region63: #{tpu_custom_call.1} parent=59 // loop_header_branch
                %940 = sbr.rel (%p937) target = $region67
              $region64: #{tpu_custom_call.1} parent=59 // loop_body
                %v944 = vld [vmem:[%s942] sm:$0xff]
                %945 = vst [vmem:[%s943] sm:$0xff] %v944
                %v946 = vld [vmem:[%s942 + $0x8] sm:$0xff]
                %947 = vst [vmem:[%s943 + $0x8] sm:$0xff] %v946
                %v948 = vld [vmem:[%s942 + $0x10] sm:$0xff]
                %949 = vst [vmem:[%s943 + $0x10] sm:$0xff] %v948
                %v950 = vld [vmem:[%s942 + $0x18] sm:$0xff]
                %951 = vst [vmem:[%s943 + $0x18] sm:$0xff] %v950
                %v952 = vld [vmem:[%s942 + $0x20] sm:$0xff]
                %953 = vst [vmem:[%s943 + $0x20] sm:$0xff] %v952
                %v954 = vld [vmem:[%s942 + $0x28] sm:$0xff]
                %955 = vst [vmem:[%s943 + $0x28] sm:$0xff] %v954
                %v956 = vld [vmem:[%s942 + $0x30] sm:$0xff]
                %957 = vst [vmem:[%s943 + $0x30] sm:$0xff] %v956
                %v958 = vld [vmem:[%s942 + $0x38] sm:$0xff]
                %959 = vst [vmem:[%s943 + $0x38] sm:$0xff] %v958
                %v960 = vld [vmem:[%s942 + $0x40] sm:$0xff]
                %961 = vst [vmem:[%s943 + $0x40] sm:$0xff] %v960
                %v962 = vld [vmem:[%s942 + $0x48] sm:$0xff]
                %963 = vst [vmem:[%s943 + $0x48] sm:$0xff] %v962
                %v964 = vld [vmem:[%s942 + $0x50] sm:$0xff]
                %965 = vst [vmem:[%s943 + $0x50] sm:$0xff] %v964
                %v966 = vld [vmem:[%s942 + $0x58] sm:$0xff]
                %967 = vst [vmem:[%s943 + $0x58] sm:$0xff] %v966
                %v968 = vld [vmem:[%s942 + $0x60] sm:$0xff]
                %969 = vst [vmem:[%s943 + $0x60] sm:$0xff] %v968
                %v970 = vld [vmem:[%s942 + $0x68] sm:$0xff]
                %971 = vst [vmem:[%s943 + $0x68] sm:$0xff] %v970
                %s972 = sadd.s32 1, %s941
                %p973 = scmp.ge.s32.totalorder %s972, %s933
                %s974 = scalar_select %p973, 0, %s972
                %s975 = smul.u32 %s974, 112
                %s976 = smul.u32 %s974, 112
                %s977 = scalar_lea.vmem %s913, %s975 [#allocation2]
                %s978 = scalar_lea.vmem %s924, %s976
              $region65: #{tpu_custom_call.1} parent=59 // loop_footer
                %s938 = sadd.s32 %s936, 1
              $region66: #{tpu_custom_call.1} parent=59 // loop_footer_branch
                %935 = sbr.rel target = $region62
              $region67: #{tpu_custom_call.1} parent=59 // loop_exit
                _
              %s979 = sdiv.u32.pop %s920, 14
              %s980 = srem.u32.pop %s920, 14
              %s981 = smul.u32 %s979, 14
              %s982 = smul.u32 8, %s981
              %s983 = scalar_lea.vmem %s913, %s982 [#allocation2]
              %s984 = smul.u32 8, %s981
              %s985 = scalar_lea.vmem %s924, %s984
              // While loop
              $region68: #{tpu_custom_call.1} parent=59 // loop_pre_header
                _
              $region69: #{tpu_custom_call.1} parent=59 // loop_header
                %s987 = sphi 0, %s989
                %p988 = scmp.ge.s32.totalorder %s987, %s980
                %s992 = sphi 0, %s999
                %s993 = sphi %s983, %s1002
                %s994 = sphi %s985, %s1003
              $region70: #{tpu_custom_call.1} parent=59 // loop_header_branch
                %991 = sbr.rel (%p988) target = $region74
              $region71: #{tpu_custom_call.1} parent=59 // loop_body
                %v995 = vld [vmem:[%s993] sm:$0xff]
                %996 = vst [vmem:[%s994] sm:$0xff] %v995
                %s997 = sadd.s32 1, %s992
                %p998 = scmp.ge.s32.totalorder %s997, %s980
                %s999 = scalar_select %p998, 0, %s997
                %s1000 = smul.u32 %s999, 8
                %s1001 = smul.u32 %s999, 8
                %s1002 = scalar_lea.vmem %s983, %s1000 [#allocation2]
                %s1003 = scalar_lea.vmem %s985, %s1001
              $region72: #{tpu_custom_call.1} parent=59 // loop_footer
                %s989 = sadd.s32 %s987, 1
              $region73: #{tpu_custom_call.1} parent=59 // loop_footer_branch
                %986 = sbr.rel target = $region69
              $region74: #{tpu_custom_call.1} parent=59 // loop_exit
                _
            $region60: #{tpu_custom_call.1} parent=51 // pred_fallthru
              _
          $region52: #{tpu_custom_call.1} parent=47 // pred_fallthru
            _
          %1079 = vnop
        $region48: #{tpu_custom_call.1} parent=43 // pred_fallthru
          _
      $region44: #{tpu_custom_call.1} parent=5 // pred_fallthru
        _
      %p1080 = scmp.le.s32.totalorder 2, %s12
      // Predicated region
      $region97: #{tpu_custom_call.1} parent=5 // pred_check
        %p1081 = pneg %p1080
      $region98: #{tpu_custom_call.1} parent=5 // pred_check_branch
        %1083 = sbr.rel (%p1081) target = $region100
      $region99: #{tpu_custom_call.1} parent=5 // pred_region
        %s1084 = ssub.s32 %s12, 2
        // Predicated region
        $region101: #{tpu_custom_call.1} parent=99 // pred_check
          %p1085 = pneg %p177
        $region102: #{tpu_custom_call.1} parent=99 // pred_check_branch
          %1087 = sbr.rel (%p1085) target = $region104
        $region103: #{tpu_custom_call.1} parent=99 // pred_region
          %s1088 = sand.u32 %s162, 1
          %s1089 = sand.u32 %s162, 1
          %s1090 = smul.addr %s1089, 112
          %s1091 = scalar_lea.vmem [#allocation2], %s1090
        $region104: #{tpu_custom_call.1} parent=99 // pred_fallthru
          _
      $region100: #{tpu_custom_call.1} parent=5 // pred_fallthru
        _
    $region6: #{tpu_custom_call.1} parent=1 // loop_footer
      %s16 = sadd.s32 1, %s12
    $region7: #{tpu_custom_call.1} parent=1 // loop_footer_branch
      %11 = sbr.rel target = $region3
    $region8: #{tpu_custom_call.1} parent=1 // loop_exit
      _

</llo_original>
